<compile_context>
chip_gen: v6e
topology: v6e:2x2x1
jax: 0.10.0
libtpu: 0.0.40
codegen_flags: <defaults>
</compile_context>

<pallas_src>
import jax
import jax.numpy as jnp
from jax.experimental import pallas as pl
from jax.experimental.pallas import tpu as pltpu


def _round_up(x, mult):
    return ((x + mult - 1) // mult) * mult


def _vmem_budget_bytes():
    """~80% of this generation's per-core VMEM, >=8 MiB headroom for Mosaic scratch."""
    try:
        cap = int(pltpu.get_tpu_info().vmem_capacity_bytes)
    except Exception:
        cap = 64 * 1024 * 1024          # conservative fallback = v7x per-TC VMEM
    budget = min(int(cap * 0.8), cap - 8 * 1024 * 1024)
    return max(budget, 16 * 1024 * 1024)


def _choose_tm(m_rows, k, n_pad, in_itemsize, out_itemsize, vmem_budget, tm_cap=2048):
    """Pick a row tile that fits the per-generation VMEM budget."""
    # Sublane packing granule of the input dtype (f32: 8, bf16: 16, int8: 32).
    sublane = max(8, 32 // max(1, in_itemsize))
    m_pad = _round_up(m_rows, sublane)

    # Resident weight (single-buffered via pl.Buffered(1)) + f32 bias.
    fixed = k * n_pad * in_itemsize + n_pad * 4
    # Double-buffered x / out row blocks plus the f32 compute intermediates
    # (logits, shifted, exp(shifted)) that live at (TM, N_pad) inside the body.
    per_row = 2 * (k * in_itemsize + n_pad * out_itemsize) + 3 * n_pad * 4

    avail = vmem_budget - fixed
    assert avail >= per_row * sublane, (
        "SoftmaxLayer Pallas kernel: the (K, N_pad) weight does not fit "
        "VMEM-resident at this size; a K/N-tiled online-LSE path is required.")

    tm = min(tm_cap, avail // per_row)
    # Keep >= 4 row tiles when m_rows allows it so the 'parallel' grid axis has
    # work to shard across v7x's two TensorCores.
    tm = min(tm, max(sublane, _round_up(pl.cdiv(m_rows, 4), 128)))
    # MXU / dtype-friendly rounding, never exceeding the (padded) row count.
    if tm >= 256:
        tm = (tm // 256) * 256          # v6e/v7x 2x256x256 MXU granule
    elif tm >= 128:
        tm = (tm // 128) * 128          # v5e 4x128x128 MXU granule
    else:
        tm = max(sublane, (tm // sublane) * sublane)
    return int(min(tm, m_pad))


def _make_kernel(n_out):
    def kernel(x_ref, w_ref, b_ref, o_ref):
        # x_ref: (TM, K)  w_ref: (K, N_pad)  b_ref: (1, N_pad) f32  o_ref: (TM, n_out)
        logits = jnp.dot(x_ref[...], w_ref[...], preferred_element_type=jnp.float32)
        logits = logits + b_ref[...]                 # bias already f32

        # Numerically stable log-softmax over the lane-padded axis; padded
        # columns carry bias = -inf -> exp(shifted) == 0 -> LSE exactly unchanged.
        m = jnp.max(logits, axis=-1, keepdims=True)
        shifted = logits - m
        lse = jnp.log(jnp.sum(jnp.exp(shifted), axis=-1, keepdims=True))
        # Store only the real columns (tail vreg store is masked; no extra HBM pass).
        o_ref[...] = (shifted[:, :n_out] - lse).astype(o_ref.dtype)
    return kernel


def prepare_softmax_layer_params(weight, bias, lane=128, compute_dtype=None):
    """One-time parameter prep (do at setup, not per call).

    Pads the output dim up to a multiple of 128 lanes (padded bias = -inf so the
    padded logits vanish from the LSE), pre-transposes the weight to (K, N_pad),
    and pre-casts the bias to f32.

    Args:
        weight: (output_size, input_size)   -- nn.Linear.weight convention
        bias:   (output_size,)
        compute_dtype: optional dtype for the MXU operands (e.g. jnp.bfloat16 on
            v6e/v7x for ~4x matmul throughput when K is large; default: keep dtype).
    Returns:
        (w_kn, b_2d, output_size) with w_kn: (K, N_pad), b_2d: (1, N_pad) float32.
    """
    output_size, _ = weight.shape
    n_pad = _round_up(output_size, lane)
    if n_pad != output_size:
        weight = jnp.pad(weight, ((0, n_pad - output_size), (0, 0)))
        bias = jnp.pad(bias, (0, n_pad - output_size), constant_values=-jnp.inf)
    if compute_dtype is not None:
        weight = weight.astype(compute_dtype)
    w_kn = weight.T                                     # (K, N_pad), lane-dense cols
    b_2d = bias.reshape(1, n_pad).astype(jnp.float32)   # pre-cast: no per-tile astype
    return w_kn, b_2d, output_size


def _build_call(n_out, m_rows, n_pad, input_size, tm, out_dtype, vmem_bytes,
                cost, use_buffered):
    grid = (pl.cdiv(m_rows, tm),)

    def resident(shape, imap):
        # Constant index_map -> the block is never re-fetched; a single buffer
        # halves its VMEM footprint (biggest relative win on v7x's 64 MiB).
        if use_buffered:
            return pl.BlockSpec(shape, imap, pipeline_mode=pl.Buffered(1))
        return pl.BlockSpec(shape, imap)

    return pl.pallas_call(
        _make_kernel(n_out),
        out_shape=jax.ShapeDtypeStruct((m_rows, n_out), out_dtype),
        grid_spec=pltpu.PrefetchScalarGridSpec(
            num_scalar_prefetch=0,
            grid=grid,
            in_specs=[
                pl.BlockSpec((tm, input_size), lambda i: (i, 0)),     # row tile of x
                resident((input_size, n_pad), lambda i: (0, 0)),      # resident W
                resident((1, n_pad), lambda i: (0, 0)),               # resident bias
            ],
            out_specs=pl.BlockSpec((tm, n_out), lambda i: (i, 0)),
        ),
        compiler_params=pltpu.CompilerParams(
            dimension_semantics=("parallel",),   # shard row tiles across TCs (v7x)
            vmem_limit_bytes=vmem_bytes,         # same number the chooser budgeted
        ),
        cost_estimate=cost,
    )


def softmax_layer_prepared(inputs, w_kn, b_2d, output_size):
    """Forward pass using pre-padded / pre-transposed parameters."""
    input_size, n_pad = w_kn.shape
    assert inputs.shape[-1] == input_size, "Dimension error of 'inputs'."

    lead_shape = inputs.shape[:-1]
    out_dtype = inputs.dtype
    x2d = inputs.reshape(-1, input_size)
    if x2d.dtype != w_kn.dtype:                 # optional bf16 compute path
        x2d = x2d.astype(w_kn.dtype)
    m_rows = x2d.shape[0]

    in_item = jnp.dtype(x2d.dtype).itemsize
    out_item = jnp.dtype(out_dtype).itemsize
    vmem_bytes = _vmem_budget_bytes()
    tm = _choose_tm(m_rows, input_size, n_pad, in_item, out_item, vmem_bytes)

    cost = pl.CostEstimate(
        flops=2 * m_rows * input_size * n_pad,
        transcendentals=m_rows * n_pad + m_rows,    # exp per logit + log per row
        bytes_accessed=int(
            x2d.size * in_item
            + w_kn.size * jnp.dtype(w_kn.dtype).itemsize
            + b_2d.size * 4
            + m_rows * output_size * out_item
        ),
    )

    args = (x2d, w_kn, b_2d)
    try:
        out = _build_call(output_size, m_rows, n_pad, input_size, tm, out_dtype,
                          vmem_bytes, cost, use_buffered=True)(*args)
    except Exception:
        # Pallas version without BlockSpec(pipeline_mode=...): fall back to the
        # default double-buffered resident weight (correct, slightly more VMEM).
        out = _build_call(output_size, m_rows, n_pad, input_size, tm, out_dtype,
                          vmem_bytes, cost, use_buffered=False)(*args)

    return out.reshape(*lead_shape, output_size)


def softmax_layer(inputs, weight, bias):
    """Drop-in forward matching the PyTorch module.

    Args:
        inputs: (..., input_size)
        weight: (output_size, input_size)
        bias:   (output_size,)
    Returns:
        (..., output_size) log-softmax outputs.
    Note: prefer calling prepare_softmax_layer_params() once at setup and then
    softmax_layer_prepared(); this convenience wrapper pads/transposes per call.
    """
    w_kn, b_2d, output_size = prepare_softmax_layer_params(weight, bias)
    return softmax_layer_prepared(inputs, w_kn, b_2d, output_size)


if __name__ == "__main__":
    # Small shapes implied by the module: batch=2, seq=8, input_size=32, output_size=16
    batch, seq, input_size, output_size = 2, 8, 32, 16

    key = jax.random.PRNGKey(0)
    kx, kw, kb = jax.random.split(key, 3)

    # nn.Linear-style init: U(-1/sqrt(in), 1/sqrt(in))
    bound = 1.0 / (input_size ** 0.5)
    weight = jax.random.uniform(kw, (output_size, input_size),
                                minval=-bound, maxval=bound, dtype=jnp.float32)
    bias = jax.random.uniform(kb, (output_size,),
                              minval=-bound, maxval=bound, dtype=jnp.float32)

    x = jax.random.normal(kx, (batch, seq, input_size), dtype=jnp.float32)

    # One-time parameter prep (pad to 128 lanes, transpose, f32 bias), then run.
    w_kn, b_2d, n_out = prepare_softmax_layer_params(weight, bias)
    out = softmax_layer_prepared(x, w_kn, b_2d, n_out)
    jax.block_until_ready(out)

    # Reference check in plain JAX.
    logits_ref = x @ weight.T + bias
    ref = jax.nn.log_softmax(logits_ref, axis=-1)
    assert out.shape == (batch, seq, output_size)
    assert jnp.allclose(out, ref, atol=1e-5, rtol=1e-5), "Mismatch vs reference"

    print("KERNEL_OK")
</pallas_src>

<mosaic_0001>
module attributes {stable_mosaic.version = 11 : i64} {
  func.func @kernel(%arg0: i32, %arg1: memref<16x32xf32, #tpu.memory_space<vmem>>, %arg2: memref<32x128xf32, #tpu.memory_space<vmem>>, %arg3: memref<1x128xf32, #tpu.memory_space<vmem>>, %arg4: memref<16x16xf32, #tpu.memory_space<vmem>>) attributes {dimension_semantics = [#tpu.dimension_semantics<parallel>], iteration_bounds = array<i64: 1>, scalar_prefetch = 0 : i64, scratch_operands = 0 : i64, tpu.core_type = #tpu.core_type<tc>, window_params = [{transform_indices = @transform_0, window_bounds = array<i64: 16, 32>}, {pipeline_mode = #tpu.pipeline_mode<synchronous>, transform_indices = @transform_1, window_bounds = array<i64: 32, 128>}, {pipeline_mode = #tpu.pipeline_mode<synchronous>, transform_indices = @transform_2, window_bounds = array<i64: 1, 128>}, {transform_indices = @transform_3, window_bounds = array<i64: 16, 16>}]} {
    %c0 = arith.constant 0 : index
    %c0_0 = arith.constant 0 : index
    %0 = vector.load %arg1[%c0, %c0_0] : memref<16x32xf32, #tpu.memory_space<vmem>>, vector<16x32xf32>
    %c0_1 = arith.constant 0 : index
    %c0_2 = arith.constant 0 : index
    %1 = vector.load %arg2[%c0_1, %c0_2] : memref<32x128xf32, #tpu.memory_space<vmem>>, vector<32x128xf32>
    %cst = arith.constant dense<0.000000e+00> : vector<16x128xf32>
    %2 = tpu.matmul %0, %1, %cst {dimension_numbers = #tpu.dot_dimension_numbers<[1], [0], [0], [1], [0, 0, 1, 1], [], []>} : vector<16x32xf32>, vector<32x128xf32>, vector<16x128xf32> -> vector<16x128xf32>
    %c0_3 = arith.constant 0 : index
    %c0_4 = arith.constant 0 : index
    %3 = vector.load %arg3[%c0_3, %c0_4] : memref<1x128xf32, #tpu.memory_space<vmem>>, vector<1x128xf32>
    %4 = vector.broadcast %3 : vector<1x128xf32> to vector<16x128xf32>
    %5 = arith.addf %2, %4 : vector<16x128xf32>
    %cst_5 = arith.constant dense<0xFF800000> : vector<16xf32>
    %6 = vector.multi_reduction <maximumf>, %5, %cst_5 [1] : vector<16x128xf32> to vector<16xf32>
    %7 = vector.shape_cast %6 : vector<16xf32> to vector<16x1xf32>
    %8 = vector.broadcast %7 : vector<16x1xf32> to vector<16x128xf32>
    %9 = arith.subf %5, %8 : vector<16x128xf32>
    %10 = math.exp %9 : vector<16x128xf32>
    %cst_6 = arith.constant dense<0.000000e+00> : vector<16xf32>
    %11 = vector.multi_reduction <add>, %10, %cst_6 [1] : vector<16x128xf32> to vector<16xf32>
    %12 = vector.shape_cast %11 : vector<16xf32> to vector<16x1xf32>
    %13 = math.log %12 : vector<16x1xf32>
    %14 = vector.extract_strided_slice %9 {offsets = [0, 0], sizes = [16, 16], strides = [1, 1]} : vector<16x128xf32> to vector<16x16xf32>
    %15 = vector.broadcast %13 : vector<16x1xf32> to vector<16x16xf32>
    %16 = arith.subf %14, %15 : vector<16x16xf32>
    %c0_7 = arith.constant 0 : index
    %c0_8 = arith.constant 0 : index
    %17 = vector.load %arg4[%c0_7, %c0_8] : memref<16x16xf32, #tpu.memory_space<vmem>>, vector<16x16xf32>
    tpu.vector_store %arg4[%c0_7, %c0_8], %16 {strides = array<i32>} : memref<16x16xf32, #tpu.memory_space<vmem>>, vector<16x16xf32>,
    return
  }
  func.func @transform_0(%arg0: i32) -> (i32, i32) {
    %c0_i32 = arith.constant 0 : i32
    %c0_i32_0 = arith.constant 0 : i32
    return %arg0, %c0_i32 : i32, i32
  }
  func.func @transform_1(%arg0: i32) -> (i32, i32) {
    %c0_i32 = arith.constant 0 : i32
    %c0_i32_0 = arith.constant 0 : i32
    %c0_i32_1 = arith.constant 0 : i32
    return %c0_i32, %c0_i32_0 : i32, i32
  }
  func.func @transform_2(%arg0: i32) -> (i32, i32) {
    %c0_i32 = arith.constant 0 : i32
    %c0_i32_0 = arith.constant 0 : i32
    %c0_i32_1 = arith.constant 0 : i32
    return %c0_i32, %c0_i32_0 : i32, i32
  }
  func.func @transform_3(%arg0: i32) -> (i32, i32) {
    %c0_i32 = arith.constant 0 : i32
    %c0_i32_0 = arith.constant 0 : i32
    return %arg0, %c0_i32 : i32, i32
  }
}

module attributes {stable_mosaic.version = 11 : i64} {
  func.func @kernel(%arg0: i32, %arg1: memref<16x32xf32, #tpu.memory_space<vmem>>, %arg2: memref<32x128xf32, #tpu.memory_space<vmem>>, %arg3: memref<1x128xf32, #tpu.memory_space<vmem>>, %arg4: memref<16x16xf32, #tpu.memory_space<vmem>>) attributes {dimension_semantics = [#tpu.dimension_semantics<parallel>], iteration_bounds = array<i64: 1>, scalar_prefetch = 0 : i64, scratch_operands = 0 : i64, tpu.core_type = #tpu.core_type<tc>, window_params = [{transform_indices = @transform_0, window_bounds = array<i64: 16, 32>}, {pipeline_mode = #tpu.pipeline_mode<synchronous>, transform_indices = @transform_1, window_bounds = array<i64: 32, 128>}, {pipeline_mode = #tpu.pipeline_mode<synchronous>, transform_indices = @transform_2, window_bounds = array<i64: 1, 128>}, {transform_indices = @transform_3, window_bounds = array<i64: 16, 16>}]} {
    %c0 = arith.constant 0 : index
    %c0_0 = arith.constant 0 : index
    %0 = vector.load %arg1[%c0, %c0_0] : memref<16x32xf32, #tpu.memory_space<vmem>>, vector<16x32xf32>
    %c0_1 = arith.constant 0 : index
    %c0_2 = arith.constant 0 : index
    %1 = vector.load %arg2[%c0_1, %c0_2] : memref<32x128xf32, #tpu.memory_space<vmem>>, vector<32x128xf32>
    %cst = arith.constant dense<0.000000e+00> : vector<16x128xf32>
    %2 = tpu.matmul %0, %1, %cst {dimension_numbers = #tpu.dot_dimension_numbers<[1], [0], [0], [1], [0, 0, 1, 1], [], []>} : vector<16x32xf32>, vector<32x128xf32>, vector<16x128xf32> -> vector<16x128xf32>
    %c0_3 = arith.constant 0 : index
    %c0_4 = arith.constant 0 : index
    %3 = vector.load %arg3[%c0_3, %c0_4] : memref<1x128xf32, #tpu.memory_space<vmem>>, vector<1x128xf32>
    %4 = vector.broadcast %3 : vector<1x128xf32> to vector<16x128xf32>
    %5 = arith.addf %2, %4 : vector<16x128xf32>
    %cst_5 = arith.constant dense<0xFF800000> : vector<16xf32>
    %6 = vector.multi_reduction <maximumf>, %5, %cst_5 [1] : vector<16x128xf32> to vector<16xf32>
    %7 = vector.shape_cast %6 : vector<16xf32> to vector<16x1xf32>
    %8 = vector.broadcast %7 : vector<16x1xf32> to vector<16x128xf32>
    %9 = arith.subf %5, %8 : vector<16x128xf32>
    %10 = math.exp %9 : vector<16x128xf32>
    %cst_6 = arith.constant dense<0.000000e+00> : vector<16xf32>
    %11 = vector.multi_reduction <add>, %10, %cst_6 [1] : vector<16x128xf32> to vector<16xf32>
    %12 = vector.shape_cast %11 : vector<16xf32> to vector<16x1xf32>
    %13 = math.log %12 : vector<16x1xf32>
    %14 = vector.extract_strided_slice %9 {offsets = [0, 0], sizes = [16, 16], strides = [1, 1]} : vector<16x128xf32> to vector<16x16xf32>
    %15 = vector.broadcast %13 : vector<16x1xf32> to vector<16x16xf32>
    %16 = arith.subf %14, %15 : vector<16x16xf32>
    %c0_7 = arith.constant 0 : index
    %c0_8 = arith.constant 0 : index
    %17 = vector.load %arg4[%c0_7, %c0_8] : memref<16x16xf32, #tpu.memory_space<vmem>>, vector<16x16xf32>
    tpu.vector_store %arg4[%c0_7, %c0_8], %16 {strides = array<i32>} : memref<16x16xf32, #tpu.memory_space<vmem>>, vector<16x16xf32>,
    return
  }
  func.func @transform_0(%arg0: i32) -> (i32, i32) {
    %c0_i32 = arith.constant 0 : i32
    %c0_i32_0 = arith.constant 0 : i32
    return %arg0, %c0_i32 : i32, i32
  }
  func.func @transform_1(%arg0: i32) -> (i32, i32) {
    %c0_i32 = arith.constant 0 : i32
    %c0_i32_0 = arith.constant 0 : i32
    %c0_i32_1 = arith.constant 0 : i32
    return %c0_i32, %c0_i32_0 : i32, i32
  }
  func.func @transform_2(%arg0: i32) -> (i32, i32) {
    %c0_i32 = arith.constant 0 : i32
    %c0_i32_0 = arith.constant 0 : i32
    %c0_i32_1 = arith.constant 0 : i32
    return %c0_i32, %c0_i32_0 : i32, i32
  }
  func.func @transform_3(%arg0: i32) -> (i32, i32) {
    %c0_i32 = arith.constant 0 : i32
    %c0_i32_0 = arith.constant 0 : i32
    return %arg0, %c0_i32 : i32, i32
  }
}

</mosaic_0001>

<llo_original>
// kernel: tpu_custom_call.1
$region0: #{tpu_custom_call.1}
  #allocation0 [shape = 'u32[]', space=smem, size = 0x4, offset = 0x4, fixed_abs, tag = 'smem constant byte address 0x4 - core index']
  #allocation1 [shape = 'u32[144,128]{1,0:T(1,128)}', space=vmem, size = 0x12000, scoped, tag = 'internal scratch']
  %s0 = inlined_call_operand.hbm [shape: f32[16,32], index: 0, kind: input, shape index: {}]
  %s1 = inlined_call_operand.hbm [shape: f32[32,128], index: 1, kind: input, shape index: {}]
  %s2 = inlined_call_operand.vmem [shape: f32[1,128], index: 2, kind: input, shape index: {}]
  %s3 = inlined_call_operand.hbm [shape: f32[16,16], index: 3, kind: output, shape index: {}]
  %s4 = sld [smem:[#allocation0]]
  $region30: #{tpu_custom_call.1} parent=0
    _
  %s6 = ssub.s32 1, %s4
  %s7 = scalar_select 0, %s6, %s4
  $region1: #{tpu_custom_call.1} parent=0
    #allocation2 [shape = 'u8[8192]{0}', space=vmem, size = 0x2000, scoped, tag = 'input window, operand 0, single buffered']
    #allocation3 [shape = 's32[1]{0}', space=sflag, size = 0x4, scoped, tag = 'scoped memory for tpu_custom_call.1']
    #allocation4 [shape = 's32[1]{0}', space=sflag, size = 0x4, scoped, tag = 'scoped memory for tpu_custom_call.1']
    #allocation5 [shape = 'u8[16384]{0}', space=vmem, size = 0x4000, scoped, tag = 'input window, operand 1, single buffered']
    #allocation6 [shape = 's32[1]{0}', space=sflag, size = 0x4, scoped, tag = 'scoped memory for tpu_custom_call.1']
    #allocation7 [shape = 'u8[8192]{0}', space=vmem, size = 0x2000, scoped, tag = 'output window, operand 0, single buffered']
    %8 = vsyncpa [#allocation3], 0
    %9 = vsyncpa [#allocation6], 0
    %10 = vsyncpa [#allocation4], 0
    // Predicated region
    $region2: #{tpu_custom_call.1} parent=1 // pred_check
      _
    $region3: #{tpu_custom_call.1} parent=1 // pred_check_branch
      %12 = sbr.rel (0) target = $region5
    $region4: #{tpu_custom_call.1} parent=1 // pred_region
      %s14 = ssub.s32 256, 256
      %15 = vsyncadd [#allocation3], %s14
      %s16 = sshll.u32 [#allocation2], 4
      %s17 = int_to_ptr.vmem [resolvable:$true] %s16
      %22 = dma.hbm_to_vmem [thread:$0]  %s0, 256, %s17, [#allocation3], 128, 128, 8
    $region5: #{tpu_custom_call.1} parent=1 // pred_fallthru
      _
    // Predicated region
    $region6: #{tpu_custom_call.1} parent=1 // pred_check
      _
    $region7: #{tpu_custom_call.1} parent=1 // pred_check_branch
      %24 = sbr.rel (0) target = $region9
    $region8: #{tpu_custom_call.1} parent=1 // pred_region
      %s26 = ssub.s32 512, 512
      %27 = vsyncadd [#allocation6], %s26
      %s28 = sshll.u32 [#allocation5], 4
      %s29 = int_to_ptr.vmem [resolvable:$true] %s28
      %34 = dma.hbm_to_vmem [thread:$0]  %s1, 512, %s29, [#allocation6], 128, 128, 8
    $region9: #{tpu_custom_call.1} parent=1 // pred_fallthru
      _
    // Predicated region
    $region10: #{tpu_custom_call.1} parent=1 // pred_check
      _
    $region11: #{tpu_custom_call.1} parent=1 // pred_check_branch
      %36 = sbr.rel (0) target = $region13
    $region12: #{tpu_custom_call.1} parent=1 // pred_region
      _
    $region13: #{tpu_custom_call.1} parent=1 // pred_fallthru
      _
    // Predicated region
    $region14: #{tpu_custom_call.1} parent=1 // pred_check
      _
    $region15: #{tpu_custom_call.1} parent=1 // pred_check_branch
      %38 = sbr.rel (0) target = $region17
    $region16: #{tpu_custom_call.1} parent=1 // pred_region
      %39 = dma.done [#allocation3], 256
    $region17: #{tpu_custom_call.1} parent=1 // pred_fallthru
      _
    // Predicated region
    $region18: #{tpu_custom_call.1} parent=1 // pred_check
      _
    $region19: #{tpu_custom_call.1} parent=1 // pred_check_branch
      %41 = sbr.rel (0) target = $region21
    $region20: #{tpu_custom_call.1} parent=1 // pred_region
      %42 = dma.done [#allocation6], 512
    $region21: #{tpu_custom_call.1} parent=1 // pred_fallthru
      _
    %v43 = vld [vmem:[#allocation2] sm:$0xff]
    %v44 = vld [vmem:[#allocation2 + $0x8] sm:$0xff]
    %v45 = vld [vmem:[#allocation5] sm:$0xff]
    %v46 = vld [vmem:[#allocation5 + $0x8] sm:$0xff]
    %v47 = vld [vmem:[#allocation5 + $0x10] sm:$0xff]
    %v48 = vld [vmem:[#allocation5 + $0x18] sm:$0xff]
    %v49 = vld [vmem:[%s2] sm:$0x1]
    %v51 = vlaneseq
    %v52 = vshrl.u32 %v51, 7
    %v53 = vsub.s32 0, %v52
    %v54 = vrot.slane %v49, %v53
    %vm56 = vcmask 261120
    %v58 = vsel %vm56, %v43, 0
    %v61 = vsel %vm56, %v44, 0
    %63 = vmatprep.subr.mxu0 0.0
    %64 = vmatpush1.msra.mxu0 0.0
    %65 = vmatprep.subr.mxu0 0.0
    %66 = vmatpush1.msra.mxu0 0.0
    %67 = vmatprep.subr.mxu0 0.0
    %68 = vmatpush1.msra.mxu0 0.0
    %69 = vmatprep.subr.mxu0 0.0
    %70 = vmatpush1.msra.mxu0 0.0
    %71 = vmatprep.subr.mxu0 0.0
    %72 = vmatpush1.msra.mxu0 0.0
    %73 = vmatprep.subr.mxu0 0.0
    %74 = vmatpush1.msra.mxu0 0.0
    %75 = vmatprep.subr.mxu0 0.0
    %76 = vmatpush1.msra.mxu0 0.0
    %77 = vmatprep.subr.mxu0 0.0
    %78 = vmatpush1.msra.mxu0 0.0
    %79 = vmatprep.subr.mxu0 0.0
    %80 = vmatpush1.msra.mxu0 0.0
    %81 = vmatprep.subr.mxu0 0.0
    %82 = vmatpush1.msra.mxu0 0.0
    %83 = vmatprep.subr.mxu0 0.0
    %84 = vmatpush1.msra.mxu0 0.0
    %85 = vmatprep.subr.mxu0 0.0
    %86 = vmatpush1.msra.mxu0 0.0
    %87 = vmatprep.subr.mxu0 0.0
    %88 = vmatpush1.msra.mxu0 %v48
    %89 = vmatprep.subr.mxu0 0.0
    %90 = vmatpush1.msra.mxu0 %v47
    %91 = vmatprep.subr.mxu0 0.0
    %92 = vmatpush1.msra.mxu0 %v46
    %93 = vmatprep.subr.mxu0 0.0
    %94 = vmatpush1.msra.mxu0 %v45
    %95 = vmatprep.subr.mxu0 0.0
    %96 = vmatpush2.msra.mxu0 0.0
    %97 = vmatprep.subr.mxu0 0.0
    %98 = vmatpush2.msra.mxu0 0.0
    %99 = vmatprep.subr.mxu0 0.0
    %100 = vmatpush2.msra.mxu0 0.0
    %101 = vmatprep.subr.mxu0 0.0
    %102 = vmatpush2.msra.mxu0 0.0
    %103 = vmatprep.subr.mxu0 0.0
    %104 = vmatpush2.msra.mxu0 0.0
    %105 = vmatprep.subr.mxu0 0.0
    %106 = vmatpush2.msra.mxu0 0.0
    %107 = vmatprep.subr.mxu0 0.0
    %108 = vmatpush2.msra.mxu0 0.0
    %109 = vmatprep.subr.mxu0 0.0
    %110 = vmatpush2.msra.mxu0 0.0
    %111 = vmatprep.subr.mxu0 0.0
    %112 = vmatpush2.msra.mxu0 0.0
    %113 = vmatprep.subr.mxu0 0.0
    %114 = vmatpush2.msra.mxu0 0.0
    %115 = vmatprep.subr.mxu0 0.0
    %116 = vmatpush2.msra.mxu0 0.0
    %117 = vmatprep.subr.mxu0 0.0
    %118 = vmatpush2.msra.mxu0 0.0
    %119 = vmatprep.subr.mxu0 0.0
    %120 = vmatpush2.msra.mxu0 0.0
    %121 = vmatprep.subr.mxu0 0.0
    %122 = vmatpush2.msra.mxu0 0.0
    %123 = vmatprep.subr.mxu0 0.0
    %124 = vmatpush2.msra.mxu0 0.0
    %125 = vmatprep.subr.mxu0 0.0
    %126 = vmatpush2.msra.mxu0 0.0
    %127 = vmatprep.mubr.f32.mxu0 0.0
    %128 = vmatmul.mubr.f32.gmra.mxu0 %v58
    %v129 = vpop.f32.mrf.mxu0
    %v130 = vadd.f32 %v54, %v129
    %v131 = vpop.f32.mrf.mxu0
    %132 = vmatprep.mubr.f32.mxu0 0.0
    %133 = vmatmul.mubr.f32.gmra.mxu0 %v61
    %v134 = vpop.f32.mrf.mxu0
    %v135 = vadd.f32 %v54, %v134
    %v136 = vpop.f32.mrf.mxu0
    %137 = vdwg.mxu0
    %138 = vmax.xlane.f32.xlu0 %v130
    %v139 = vpop.xlane.xlu0 %138
    %140 = vmax.xlane.f32.xlu0 %v135
    %v141 = vpop.xlane.xlu0 %140
    %v142 = vsub.f32 %v130, %v139
    %v143 = vsub.f32 %v135, %v141
    %v144 = vmul.f32 %v142, 1.442695
    %v145 = vpow.pop %v144
    %v146 = vmul.f32 %v143, 1.442695
    %v147 = vpow.pop %v146
    %148 = vadd.xlane.f32.xlu0 %v145
    %v149 = vpop.xlane.xlu0 %148
    %150 = vadd.xlane.f32.xlu0 %v147
    %v151 = vpop.xlane.xlu0 %150
    %v152 = vlog2.pop %v149
    %v153 = vmul.f32 %v152, 0.6931472
    %v154 = vlog2.pop %v151
    %v155 = vmul.f32 %v154, 0.6931472
    %v156 = vsub.f32 %v142, %v153
    %v157 = vsub.f32 %v143, %v155
    %vm158 = vcmask 130048
    %159 = vst.msk [vmem:[#allocation7] sm:$0xff] %vm158, %v156
    %160 = vst.msk [vmem:[#allocation7 + $0x8] sm:$0xff] %vm158, %v157
    // Predicated region
    $region22: #{tpu_custom_call.1} parent=1 // pred_check
      _
    $region23: #{tpu_custom_call.1} parent=1 // pred_check_branch
      %162 = sbr.rel (0) target = $region25
    $region24: #{tpu_custom_call.1} parent=1 // pred_region
      %s164 = ssub.s32 256, 256
      %165 = vsyncadd [#allocation4], %s164
      %s166 = sshll.u32 [#allocation7], 4
      %s167 = int_to_ptr.vmem [resolvable:$true] %s166
      %172 = dma.vmem_to_hbm [thread:$0]  %s167, 256, %s3, [#allocation4], 128, 128, 8
    $region25: #{tpu_custom_call.1} parent=1 // pred_fallthru
      _
    // Predicated region
    $region26: #{tpu_custom_call.1} parent=1 // pred_check
      _
    $region27: #{tpu_custom_call.1} parent=1 // pred_check_branch
      %174 = sbr.rel (0) target = $region29
    $region28: #{tpu_custom_call.1} parent=1 // pred_region
      %175 = dma.done [#allocation4], 256
    $region29: #{tpu_custom_call.1} parent=1 // pred_fallthru
      _
    %176 = vsyncpa [#allocation3], 1
    %177 = vsyncpa [#allocation6], 1
    %178 = vsyncpa [#allocation4], 1

// kernel: tpu_custom_call.1
$region0: #{tpu_custom_call.1}
  #allocation0 [shape = 'u32[]', space=smem, size = 0x4, offset = 0x4, fixed_abs, tag = 'smem constant byte address 0x4 - core index']
  #allocation1 [shape = 'u32[144,128]{1,0:T(1,128)}', space=vmem, size = 0x12000, scoped, tag = 'internal scratch']
  %s0 = inlined_call_operand.hbm [shape: f32[16,32], index: 0, kind: input, shape index: {}]
  %s1 = inlined_call_operand.hbm [shape: f32[32,128], index: 1, kind: input, shape index: {}]
  %s2 = inlined_call_operand.vmem [shape: f32[1,128], index: 2, kind: input, shape index: {}]
  %s3 = inlined_call_operand.hbm [shape: f32[16,16], index: 3, kind: output, shape index: {}]
  %s4 = sld [smem:[#allocation0]]
  $region30: #{tpu_custom_call.1} parent=0
    _
  %s6 = ssub.s32 1, %s4
  %s7 = scalar_select 0, %s6, %s4
  $region1: #{tpu_custom_call.1} parent=0
    #allocation2 [shape = 'u8[8192]{0}', space=vmem, size = 0x2000, scoped, tag = 'input window, operand 0, single buffered']
    #allocation3 [shape = 's32[1]{0}', space=sflag, size = 0x4, scoped, tag = 'scoped memory for tpu_custom_call.1']
    #allocation4 [shape = 's32[1]{0}', space=sflag, size = 0x4, scoped, tag = 'scoped memory for tpu_custom_call.1']
    #allocation5 [shape = 'u8[16384]{0}', space=vmem, size = 0x4000, scoped, tag = 'input window, operand 1, single buffered']
    #allocation6 [shape = 's32[1]{0}', space=sflag, size = 0x4, scoped, tag = 'scoped memory for tpu_custom_call.1']
    #allocation7 [shape = 'u8[8192]{0}', space=vmem, size = 0x2000, scoped, tag = 'output window, operand 0, single buffered']
    %8 = vsyncpa [#allocation3], 0
    %9 = vsyncpa [#allocation6], 0
    %10 = vsyncpa [#allocation4], 0
    // Predicated region
    $region2: #{tpu_custom_call.1} parent=1 // pred_check
      _
    $region3: #{tpu_custom_call.1} parent=1 // pred_check_branch
      %12 = sbr.rel (0) target = $region5
    $region4: #{tpu_custom_call.1} parent=1 // pred_region
      %s14 = ssub.s32 256, 256
      %15 = vsyncadd [#allocation3], %s14
      %s16 = sshll.u32 [#allocation2], 4
      %s17 = int_to_ptr.vmem [resolvable:$true] %s16
      %22 = dma.hbm_to_vmem [thread:$0]  %s0, 256, %s17, [#allocation3], 128, 128, 8
    $region5: #{tpu_custom_call.1} parent=1 // pred_fallthru
      _
    // Predicated region
    $region6: #{tpu_custom_call.1} parent=1 // pred_check
      _
    $region7: #{tpu_custom_call.1} parent=1 // pred_check_branch
      %24 = sbr.rel (0) target = $region9
    $region8: #{tpu_custom_call.1} parent=1 // pred_region
      %s26 = ssub.s32 512, 512
      %27 = vsyncadd [#allocation6], %s26
      %s28 = sshll.u32 [#allocation5], 4
      %s29 = int_to_ptr.vmem [resolvable:$true] %s28
      %34 = dma.hbm_to_vmem [thread:$0]  %s1, 512, %s29, [#allocation6], 128, 128, 8
    $region9: #{tpu_custom_call.1} parent=1 // pred_fallthru
      _
    // Predicated region
    $region10: #{tpu_custom_call.1} parent=1 // pred_check
      _
    $region11: #{tpu_custom_call.1} parent=1 // pred_check_branch
      %36 = sbr.rel (0) target = $region13
    $region12: #{tpu_custom_call.1} parent=1 // pred_region
      _
    $region13: #{tpu_custom_call.1} parent=1 // pred_fallthru
      _
    // Predicated region
    $region14: #{tpu_custom_call.1} parent=1 // pred_check
      _
    $region15: #{tpu_custom_call.1} parent=1 // pred_check_branch
      %38 = sbr.rel (0) target = $region17
    $region16: #{tpu_custom_call.1} parent=1 // pred_region
      %39 = dma.done [#allocation3], 256
    $region17: #{tpu_custom_call.1} parent=1 // pred_fallthru
      _
    // Predicated region
    $region18: #{tpu_custom_call.1} parent=1 // pred_check
      _
    $region19: #{tpu_custom_call.1} parent=1 // pred_check_branch
      %41 = sbr.rel (0) target = $region21
    $region20: #{tpu_custom_call.1} parent=1 // pred_region
      %42 = dma.done [#allocation6], 512
    $region21: #{tpu_custom_call.1} parent=1 // pred_fallthru
      _
    %v43 = vld [vmem:[#allocation2] sm:$0xff]
    %v44 = vld [vmem:[#allocation2 + $0x8] sm:$0xff]
    %v45 = vld [vmem:[#allocation5] sm:$0xff]
    %v46 = vld [vmem:[#allocation5 + $0x8] sm:$0xff]
    %v47 = vld [vmem:[#allocation5 + $0x10] sm:$0xff]
    %v48 = vld [vmem:[#allocation5 + $0x18] sm:$0xff]
    %v49 = vld [vmem:[%s2] sm:$0x1]
    %v51 = vlaneseq
    %v52 = vshrl.u32 %v51, 7
    %v53 = vsub.s32 0, %v52
    %v54 = vrot.slane %v49, %v53
    %vm56 = vcmask 261120
    %v58 = vsel %vm56, %v43, 0
    %v61 = vsel %vm56, %v44, 0
    %63 = vmatprep.subr.mxu0 0.0
    %64 = vmatpush1.msra.mxu0 0.0
    %65 = vmatprep.subr.mxu0 0.0
    %66 = vmatpush1.msra.mxu0 0.0
    %67 = vmatprep.subr.mxu0 0.0
    %68 = vmatpush1.msra.mxu0 0.0
    %69 = vmatprep.subr.mxu0 0.0
    %70 = vmatpush1.msra.mxu0 0.0
    %71 = vmatprep.subr.mxu0 0.0
    %72 = vmatpush1.msra.mxu0 0.0
    %73 = vmatprep.subr.mxu0 0.0
    %74 = vmatpush1.msra.mxu0 0.0
    %75 = vmatprep.subr.mxu0 0.0
    %76 = vmatpush1.msra.mxu0 0.0
    %77 = vmatprep.subr.mxu0 0.0
    %78 = vmatpush1.msra.mxu0 0.0
    %79 = vmatprep.subr.mxu0 0.0
    %80 = vmatpush1.msra.mxu0 0.0
    %81 = vmatprep.subr.mxu0 0.0
    %82 = vmatpush1.msra.mxu0 0.0
    %83 = vmatprep.subr.mxu0 0.0
    %84 = vmatpush1.msra.mxu0 0.0
    %85 = vmatprep.subr.mxu0 0.0
    %86 = vmatpush1.msra.mxu0 0.0
    %87 = vmatprep.subr.mxu0 0.0
    %88 = vmatpush1.msra.mxu0 %v48
    %89 = vmatprep.subr.mxu0 0.0
    %90 = vmatpush1.msra.mxu0 %v47
    %91 = vmatprep.subr.mxu0 0.0
    %92 = vmatpush1.msra.mxu0 %v46
    %93 = vmatprep.subr.mxu0 0.0
    %94 = vmatpush1.msra.mxu0 %v45
    %95 = vmatprep.subr.mxu0 0.0
    %96 = vmatpush2.msra.mxu0 0.0
    %97 = vmatprep.subr.mxu0 0.0
    %98 = vmatpush2.msra.mxu0 0.0
    %99 = vmatprep.subr.mxu0 0.0
    %100 = vmatpush2.msra.mxu0 0.0
    %101 = vmatprep.subr.mxu0 0.0
    %102 = vmatpush2.msra.mxu0 0.0
    %103 = vmatprep.subr.mxu0 0.0
    %104 = vmatpush2.msra.mxu0 0.0
    %105 = vmatprep.subr.mxu0 0.0
    %106 = vmatpush2.msra.mxu0 0.0
    %107 = vmatprep.subr.mxu0 0.0
    %108 = vmatpush2.msra.mxu0 0.0
    %109 = vmatprep.subr.mxu0 0.0
    %110 = vmatpush2.msra.mxu0 0.0
    %111 = vmatprep.subr.mxu0 0.0
    %112 = vmatpush2.msra.mxu0 0.0
    %113 = vmatprep.subr.mxu0 0.0
    %114 = vmatpush2.msra.mxu0 0.0
    %115 = vmatprep.subr.mxu0 0.0
    %116 = vmatpush2.msra.mxu0 0.0
    %117 = vmatprep.subr.mxu0 0.0
    %118 = vmatpush2.msra.mxu0 0.0
    %119 = vmatprep.subr.mxu0 0.0
    %120 = vmatpush2.msra.mxu0 0.0
    %121 = vmatprep.subr.mxu0 0.0
    %122 = vmatpush2.msra.mxu0 0.0
    %123 = vmatprep.subr.mxu0 0.0
    %124 = vmatpush2.msra.mxu0 0.0
    %125 = vmatprep.subr.mxu0 0.0
    %126 = vmatpush2.msra.mxu0 0.0
    %127 = vmatprep.mubr.f32.mxu0 0.0
    %128 = vmatmul.mubr.f32.gmra.mxu0 %v58
    %v129 = vpop.f32.mrf.mxu0
    %v130 = vadd.f32 %v54, %v129
    %v131 = vpop.f32.mrf.mxu0
    %132 = vmatprep.mubr.f32.mxu0 0.0
    %133 = vmatmul.mubr.f32.gmra.mxu0 %v61
    %v134 = vpop.f32.mrf.mxu0
    %v135 = vadd.f32 %v54, %v134
    %v136 = vpop.f32.mrf.mxu0
    %137 = vdwg.mxu0
    %138 = vmax.xlane.f32.xlu0 %v130
    %v139 = vpop.xlane.xlu0 %138
    %140 = vmax.xlane.f32.xlu0 %v135
    %v141 = vpop.xlane.xlu0 %140
    %v142 = vsub.f32 %v130, %v139
    %v143 = vsub.f32 %v135, %v141
    %v144 = vmul.f32 %v142, 1.442695
    %v145 = vpow.pop %v144
    %v146 = vmul.f32 %v143, 1.442695
    %v147 = vpow.pop %v146
    %148 = vadd.xlane.f32.xlu0 %v145
    %v149 = vpop.xlane.xlu0 %148
    %150 = vadd.xlane.f32.xlu0 %v147
    %v151 = vpop.xlane.xlu0 %150
    %v152 = vlog2.pop %v149
    %v153 = vmul.f32 %v152, 0.6931472
    %v154 = vlog2.pop %v151
    %v155 = vmul.f32 %v154, 0.6931472
    %v156 = vsub.f32 %v142, %v153
    %v157 = vsub.f32 %v143, %v155
    %vm158 = vcmask 130048
    %159 = vst.msk [vmem:[#allocation7] sm:$0xff] %vm158, %v156
    %160 = vst.msk [vmem:[#allocation7 + $0x8] sm:$0xff] %vm158, %v157
    // Predicated region
    $region22: #{tpu_custom_call.1} parent=1 // pred_check
      _
    $region23: #{tpu_custom_call.1} parent=1 // pred_check_branch
      %162 = sbr.rel (0) target = $region25
    $region24: #{tpu_custom_call.1} parent=1 // pred_region
      %s164 = ssub.s32 256, 256
      %165 = vsyncadd [#allocation4], %s164
      %s166 = sshll.u32 [#allocation7], 4
      %s167 = int_to_ptr.vmem [resolvable:$true] %s166
      %172 = dma.vmem_to_hbm [thread:$0]  %s167, 256, %s3, [#allocation4], 128, 128, 8
    $region25: #{tpu_custom_call.1} parent=1 // pred_fallthru
      _
    // Predicated region
    $region26: #{tpu_custom_call.1} parent=1 // pred_check
      _
    $region27: #{tpu_custom_call.1} parent=1 // pred_check_branch
      %174 = sbr.rel (0) target = $region29
    $region28: #{tpu_custom_call.1} parent=1 // pred_region
      %175 = dma.done [#allocation4], 256
    $region29: #{tpu_custom_call.1} parent=1 // pred_fallthru
      _
    %176 = vsyncpa [#allocation3], 1
    %177 = vsyncpa [#allocation6], 1
    %178 = vsyncpa [#allocation4], 1

</llo_original>
